<compile_context>
chip_gen: v7x
topology: tpu7x:2x2x1
jax: 0.10.0
libtpu: 0.0.40
codegen_flags: <defaults>
</compile_context>

<pallas_src>
import functools
import numpy as np

import jax
import jax.numpy as jnp
from jax.experimental import pallas as pl
from jax.experimental.pallas import tpu as pltpu

CUBIC_A = -0.75  # PyTorch bicubic convolution constant


def _cubic1(x):
    # |x| <= 1 branch of Keys cubic kernel
    return ((CUBIC_A + 2.0) * x - (CUBIC_A + 3.0)) * x * x + 1.0


def _cubic2(x):
    # 1 < |x| < 2 branch of Keys cubic kernel
    return ((CUBIC_A * x - 5.0 * CUBIC_A) * x + 8.0 * CUBIC_A) * x - 4.0 * CUBIC_A


def _bicubic_weight_matrix(in_size, out_size, scale):
    """Dense (out_size, in_size) NumPy matrix M with M @ v == PyTorch
    F.interpolate(mode='bicubic', align_corners=False,
    recompute_scale_factor=False) along one axis.

    `scale` is 1/scale_factor (input pixels per output pixel)."""
    i = np.arange(out_size, dtype=np.float64)
    src = scale * (i + 0.5) - 0.5            # area_pixel_compute_source_index
    x0 = np.floor(src)
    t = src - x0
    coeffs = np.stack(
        [_cubic2(t + 1.0), _cubic1(t), _cubic1(1.0 - t), _cubic2(2.0 - t)], axis=1
    )                                        # (out, 4)
    idx = x0[:, None].astype(np.int64) + np.arange(-1, 3, dtype=np.int64)[None, :]
    idx = np.clip(idx, 0, in_size - 1)       # upsample_get_value_bounded
    M = np.zeros((out_size, in_size), np.float64)
    np.add.at(M, (np.arange(out_size)[:, None], idx), coeffs)
    return M.astype(np.float32)


# ----------------------------------------------------------------------------
# Fused kernel: TB images per grid step -> resize (2 matmuls) + clamp + head.
# ----------------------------------------------------------------------------
def _fused_ocr_kernel(x_ref, wwk_ref, whkT_ref, hw_ref, hb_ref, o_ref, *, precision):
    # x_ref   : (TB*W, C*H)     any dtype  rows = tb*W + w, lanes = c*H + h
    # wwk_ref : (TB*OW, TB*W)   cdt        kron(I_TB, ww/255)
    # whkT_ref: (C*H, C*OH)     cdt        kron(I_C, wh)^T
    # hw_ref  : (C*OH, K_pad)   cdt        head weights (features = c*OH + oh)
    # hb_ref  : (1, K_pad)      f32        head bias (zero-padded)
    # o_ref   : (TB*OW, K_pad)  f32        logits, rows = tb*OW + ow
    cdt = wwk_ref.dtype

    x = x_ref[...].astype(cdt)                                     # (TB*W, C*H)
    # width resize (1/255 folded into weights): -> (TB*OW, C*H)
    s = jnp.dot(wwk_ref[...], x,
                preferred_element_type=jnp.float32, precision=precision)
    # height resize (per channel via kron): -> (TB*OW, C*OH)
    y = jnp.dot(s.astype(cdt), whkT_ref[...],
                preferred_element_type=jnp.float32, precision=precision)
    # clamp_(0, 1) in f32 (the /255 already happened inside the resize weights)
    y = jnp.clip(y, 0.0, 1.0)
    # head: one large stacked matmul -> (TB*OW, K_pad)
    logits = jnp.dot(y.astype(cdt), hw_ref[...],
                     preferred_element_type=jnp.float32, precision=precision)
    o_ref[...] = logits + hb_ref[...]


def _pick_batch_block(B, batch_block):
    # Keep >= 2 grid steps where possible so both v7x TensorCores get work.
    if B < 2:
        return 1
    return max(1, min(batch_block, B // 2))


@functools.partial(jax.jit, static_argnames=("out_h", "use_bf16", "batch_block"))
def ocr_forward(x_nhwc, head_w, head_b, *, out_h=40, use_bf16=True, batch_block=8):
    B, H, W, C = x_nhwc.shape

    # PyTorch output sizes: floor(in_size * float(scale_factor)); scale used by
    # the source-index formula with recompute_scale_factor=False is 1/scale_factor.
    sf = float(out_h) / float(H)
    OH = int(np.floor(H * sf))
    OW = int(np.floor(W * sf))
    scale = 1.0 / sf

    # Host-side constant interpolation matrices (folded at trace time).
    wh = _bicubic_weight_matrix(H, OH, scale)                     # (OH, H)
    ww = _bicubic_weight_matrix(W, OW, scale) * (1.0 / 255.0)     # (OW, W); /255 folded (exact: resize is linear)

    TB = _pick_batch_block(B, batch_block)
    n_blocks = -(-B // TB)
    B_pad = n_blocks * TB

    cdt = jnp.bfloat16 if use_bf16 else jnp.float32
    # Batch-stacked width weights and per-channel height weights.
    wwk = jnp.asarray(np.kron(np.eye(TB, dtype=np.float32), ww), dtype=cdt)    # (TB*OW, TB*W)
    whkT = jnp.asarray(np.kron(np.eye(C, dtype=np.float32), wh.T), dtype=cdt)  # (C*H, C*OH)

    F_dim, K = head_w.shape
    assert F_dim == C * OH, "head expects C*OH features per width column"
    K_pad = ((K + 127) // 128) * 128        # lane-dense output stores
    hw = jnp.zeros((F_dim, K_pad), cdt).at[:, :K].set(head_w.astype(cdt))
    hb = jnp.zeros((1, K_pad), jnp.float32).at[0, :K].set(
        head_b.astype(jnp.float32).reshape(-1))

    # x.permute((0,3,1,2)) expressed as NHWC -> (B, W, C, H) -> (B*W, C*H).
    # TODO(synk): at production sizes, accept the (B*W, C*H) layout directly (or
    #             use allow_input_fusion) to avoid this extra HBM read+write.
    x2d = jnp.transpose(x_nhwc, (0, 2, 3, 1)).reshape(B * W, C * H)
    if B_pad != B:
        x2d = jnp.pad(x2d, ((0, (B_pad - B) * W), (0, 0)))

    # f32 parity path: HIGH halves MXU passes vs HIGHEST; use HIGHEST only if
    # bit-level parity with PyTorch is mandatory.
    precision = None if use_bf16 else jax.lax.Precision.HIGH
    kernel = functools.partial(_fused_ocr_kernel, precision=precision)

    out2d = pl.pallas_call(
        kernel,
        out_shape=jax.ShapeDtypeStruct((B_pad * OW, K_pad), jnp.float32),
        grid=(n_blocks,),
        in_specs=[
            pl.BlockSpec((TB * W, C * H), lambda b: (b, 0)),
            pl.BlockSpec((TB * OW, TB * W), lambda b: (0, 0)),
            pl.BlockSpec((C * H, C * OH), lambda b: (0, 0)),
            pl.BlockSpec((C * OH, K_pad), lambda b: (0, 0)),
            pl.BlockSpec((1, K_pad), lambda b: (0, 0)),
        ],
        out_specs=pl.BlockSpec((TB * OW, K_pad), lambda b: (b, 0)),
        compiler_params=pltpu.CompilerParams(
            dimension_semantics=("parallel",)),
    )(x2d, wwk, whkT, hw, hb)

    out = out2d.reshape(B_pad, OW, K_pad)
    # Slice away K padding / batch padding.  Consumers that tolerate padding can
    # take `out` (or out2d) directly to avoid this extra output pass.
    return out[:B, :, :K]


if __name__ == "__main__":
    key = jax.random.PRNGKey(0)
    kx, kw, kb = jax.random.split(key, 3)

    # Small NHWC image-like input (the module permutes NHWC -> NCHW itself).
    # uint8 or bf16 images also work; the cast to compute dtype happens in-kernel.
    B, H, W, C = 2, 16, 32, 3
    x_nhwc = jax.random.uniform(kx, (B, H, W, C), jnp.float32, 0.0, 255.0)

    # Deterministic synthetic stand-in head parameters (base_model unspecified).
    num_classes = 32
    feat_dim = C * 40
    head_w = jax.random.normal(kw, (feat_dim, num_classes), jnp.float32) * 0.02
    head_b = jax.random.normal(kb, (1, num_classes), jnp.float32) * 0.01

    out = ocr_forward(x_nhwc, head_w, head_b)
    jax.block_until_ready(out)
    assert out.shape == (B, (W * 40) // H, num_classes), out.shape
    print("KERNEL_OK")
</pallas_src>

<mosaic_0001>
module attributes {stable_mosaic.version = 11 : i64} {
  func.func @_fused_ocr_kernel(%arg0: i32, %arg1: memref<32x48xf32, #tpu.memory_space<vmem>>, %arg2: memref<80x32xbf16, #tpu.memory_space<vmem>>, %arg3: memref<48x120xbf16, #tpu.memory_space<vmem>>, %arg4: memref<120x128xbf16, #tpu.memory_space<vmem>>, %arg5: memref<1x128xf32, #tpu.memory_space<vmem>>, %arg6: memref<80x128xf32, #tpu.memory_space<vmem>>) attributes {dimension_semantics = [#tpu.dimension_semantics<parallel>], iteration_bounds = array<i64: 2>, scalar_prefetch = 0 : i64, scratch_operands = 0 : i64, tpu.core_type = #tpu.core_type<tc>, window_params = [{transform_indices = @transform_0, window_bounds = array<i64: 32, 48>}, {pipeline_mode = #tpu.pipeline_mode<synchronous>, transform_indices = @transform_1, window_bounds = array<i64: 80, 32>}, {pipeline_mode = #tpu.pipeline_mode<synchronous>, transform_indices = @transform_2, window_bounds = array<i64: 48, 120>}, {pipeline_mode = #tpu.pipeline_mode<synchronous>, transform_indices = @transform_3, window_bounds = array<i64: 120, 128>}, {pipeline_mode = #tpu.pipeline_mode<synchronous>, transform_indices = @transform_4, window_bounds = array<i64: 1, 128>}, {transform_indices = @transform_5, window_bounds = array<i64: 80, 128>}]} {
    %c0 = arith.constant 0 : index
    %c0_0 = arith.constant 0 : index
    %0 = vector.load %arg1[%c0, %c0_0] : memref<32x48xf32, #tpu.memory_space<vmem>>, vector<32x48xf32>
    %1 = arith.truncf %0 : vector<32x48xf32> to vector<32x48xbf16>
    %c0_1 = arith.constant 0 : index
    %c0_2 = arith.constant 0 : index
    %2 = vector.load %arg2[%c0_1, %c0_2] : memref<80x32xbf16, #tpu.memory_space<vmem>>, vector<80x32xbf16>
    %cst = arith.constant dense<0.000000e+00> : vector<80x48xf32>
    %3 = tpu.matmul %2, %1, %cst {dimension_numbers = #tpu.dot_dimension_numbers<[1], [0], [0], [1], [0, 0, 1, 1], [], []>} : vector<80x32xbf16>, vector<32x48xbf16>, vector<80x48xf32> -> vector<80x48xf32>
    %4 = arith.truncf %3 : vector<80x48xf32> to vector<80x48xbf16>
    %c0_3 = arith.constant 0 : index
    %c0_4 = arith.constant 0 : index
    %5 = vector.load %arg3[%c0_3, %c0_4] : memref<48x120xbf16, #tpu.memory_space<vmem>>, vector<48x120xbf16>
    %cst_5 = arith.constant dense<0.000000e+00> : vector<80x120xf32>
    %6 = tpu.matmul %4, %5, %cst_5 {dimension_numbers = #tpu.dot_dimension_numbers<[1], [0], [0], [1], [0, 0, 1, 1], [], []>} : vector<80x48xbf16>, vector<48x120xbf16>, vector<80x120xf32> -> vector<80x120xf32>
    %cst_6 = arith.constant 0.000000e+00 : f32
    %cst_7 = arith.constant 1.000000e+00 : f32
    %7 = vector.broadcast %cst_6 : f32 to vector<80x120xf32>
    %8 = arith.maximumf %7, %6 : vector<80x120xf32>
    %9 = vector.broadcast %cst_7 : f32 to vector<80x120xf32>
    %10 = arith.minimumf %9, %8 : vector<80x120xf32>
    %11 = arith.truncf %10 : vector<80x120xf32> to vector<80x120xbf16>
    %c0_8 = arith.constant 0 : index
    %c0_9 = arith.constant 0 : index
    %12 = vector.load %arg4[%c0_8, %c0_9] : memref<120x128xbf16, #tpu.memory_space<vmem>>, vector<120x128xbf16>
    %cst_10 = arith.constant dense<0.000000e+00> : vector<80x128xf32>
    %13 = tpu.matmul %11, %12, %cst_10 {dimension_numbers = #tpu.dot_dimension_numbers<[1], [0], [0], [1], [0, 0, 1, 1], [], []>} : vector<80x120xbf16>, vector<120x128xbf16>, vector<80x128xf32> -> vector<80x128xf32>
    %c0_11 = arith.constant 0 : index
    %c0_12 = arith.constant 0 : index
    %14 = vector.load %arg5[%c0_11, %c0_12] : memref<1x128xf32, #tpu.memory_space<vmem>>, vector<1x128xf32>
    %15 = vector.broadcast %14 : vector<1x128xf32> to vector<80x128xf32>
    %16 = arith.addf %13, %15 : vector<80x128xf32>
    %c0_13 = arith.constant 0 : index
    %c0_14 = arith.constant 0 : index
    %17 = vector.load %arg6[%c0_13, %c0_14] : memref<80x128xf32, #tpu.memory_space<vmem>>, vector<80x128xf32>
    tpu.vector_store %arg6[%c0_13, %c0_14], %16 {strides = array<i32>} : memref<80x128xf32, #tpu.memory_space<vmem>>, vector<80x128xf32>,
    return
  }
  func.func @transform_0(%arg0: i32) -> (i32, i32) {
    %c0_i32 = arith.constant 0 : i32
    %c0_i32_0 = arith.constant 0 : i32
    return %arg0, %c0_i32 : i32, i32
  }
  func.func @transform_1(%arg0: i32) -> (i32, i32) {
    %c0_i32 = arith.constant 0 : i32
    %c0_i32_0 = arith.constant 0 : i32
    %c0_i32_1 = arith.constant 0 : i32
    return %c0_i32, %c0_i32_0 : i32, i32
  }
  func.func @transform_2(%arg0: i32) -> (i32, i32) {
    %c0_i32 = arith.constant 0 : i32
    %c0_i32_0 = arith.constant 0 : i32
    %c0_i32_1 = arith.constant 0 : i32
    return %c0_i32, %c0_i32_0 : i32, i32
  }
  func.func @transform_3(%arg0: i32) -> (i32, i32) {
    %c0_i32 = arith.constant 0 : i32
    %c0_i32_0 = arith.constant 0 : i32
    %c0_i32_1 = arith.constant 0 : i32
    return %c0_i32, %c0_i32_0 : i32, i32
  }
  func.func @transform_4(%arg0: i32) -> (i32, i32) {
    %c0_i32 = arith.constant 0 : i32
    %c0_i32_0 = arith.constant 0 : i32
    %c0_i32_1 = arith.constant 0 : i32
    return %c0_i32, %c0_i32_0 : i32, i32
  }
  func.func @transform_5(%arg0: i32) -> (i32, i32) {
    %c0_i32 = arith.constant 0 : i32
    %c0_i32_0 = arith.constant 0 : i32
    return %arg0, %c0_i32 : i32, i32
  }
}

</mosaic_0001>

<llo_original>
// kernel: ocr_forward.1
$region0: #{ocr_forward.1}
  #allocation0 [shape = 'u32[]', space=smem, size = 0x4, offset = 0x4, fixed_abs, tag = 'smem constant byte address 0x4 - core index']
  #allocation1 [shape = 'u32[144,128]{1,0:T(1,128)}', space=vmem, size = 0x12000, scoped, tag = 'internal scratch']
  %s0 = inlined_call_operand.vmem [shape: f32[64,48], index: 0, kind: input, shape index: {}]
  %s1 = inlined_call_operand.vmem [shape: bf16[80,32], index: 1, kind: input, shape index: {}]
  %s2 = inlined_call_operand.vmem [shape: bf16[48,120], index: 2, kind: input, shape index: {}]
  %s3 = inlined_call_operand.vmem [shape: bf16[120,128], index: 3, kind: input, shape index: {}]
  %s4 = inlined_call_operand.vmem [shape: f32[1,128], index: 4, kind: input, shape index: {}]
  %s5 = inlined_call_operand.vmem [shape: f32[160,128], index: 5, kind: output, shape index: {}]
  %s6 = sld [smem:[#allocation0]]
  $region53: #{ocr_forward.1} parent=0
    _
  %s8 = ssub.s32 1, %s6
  %s9 = scalar_select 0, %s8, %s6
  loop: start=0, step=1, limit=4
  $region2: #{ocr_forward.1} parent=0 // loop_pre_header
    _
  $region3: #{ocr_forward.1} parent=0 // loop_header
    %s11 = sphi 0, %s15
    %p12 = scmp.ge.s32.totalorder %s11, 4
    %s21 = sphi 0, %s23
    %s24 = sphi 0, %s21
    %s25 = sphi 0, %s24
    %s41 = sphi 0, %s25
    %s45 = sphi 0, %s45
    %s47 = sphi 0, %s45
    %s48 = sphi 0, %s47
    %s62 = sphi 0, %s48
    %s66 = sphi 0, %s66
    %s68 = sphi 0, %s66
    %s69 = sphi 0, %s68
    %s83 = sphi 0, %s69
    %s87 = sphi 0, %s87
    %s89 = sphi 0, %s87
    %s90 = sphi 0, %s89
    %s104 = sphi 0, %s90
    %s108 = sphi 0, %s108
    %s110 = sphi 0, %s108
    %s111 = sphi 0, %s110
    %s125 = sphi 0, %s111
    %s131 = sphi 0, %s133
    %s134 = sphi 0, %s131
    %s135 = sphi 0, %s134
    %s151 = sphi 0, %s135
  $region4: #{ocr_forward.1} parent=0 // loop_header_branch
    %14 = sbr.rel (%p12) target = $region8
  $region5: #{ocr_forward.1} parent=0 // loop_body
    %s16 = ssub.s32 %s11, 1
    %s17 = ssub.s32 %s11, 2
    %s18 = sadd.s32 %s11, 1
    %s19 = ssub.s32 %s11, %s18
    %p20 = scmp.eq.s32.totalorder %s19, 0
    %s22 = sadd.s32 %s21, 1
    %s23 = scalar_select %p20, %s21, %s22
    %p26 = pneg %p20
    %p27 = scmp.eq.s32.totalorder %s11, 1
    %p28 = por %p26, %p27
    %p29 = scmp.ne.s32.totalorder %s21, %s24
    %p30 = scmp.eq.s32.totalorder %s11, 0
    %p31 = por %p29, %p30
    %p32 = scmp.ne.s32.totalorder %s21, %s24
    %p33 = scmp.eq.s32.totalorder %s16, 1
    %p34 = por %p32, %p33
    %p35 = scmp.ne.s32.totalorder %s24, %s25
    %p36 = scmp.eq.s32.totalorder %s16, 0
    %p37 = por %p35, %p36
    %p38 = scmp.ne.s32.totalorder %s24, %s25
    %p39 = scmp.eq.s32.totalorder %s17, 1
    %p40 = por %p38, %p39
    %p42 = scmp.ne.s32.totalorder %s25, %s41
    %p43 = scmp.eq.s32.totalorder %s17, 0
    %p44 = por %p42, %p43
    %s46 = sadd.s32 %s45, 1
    %p49 = scmp.eq.s32.totalorder %s11, 1
    %p50 = scmp.ne.s32.totalorder %s45, %s47
    %p51 = scmp.eq.s32.totalorder %s11, 0
    %p52 = por %p50, %p51
    %p53 = scmp.ne.s32.totalorder %s45, %s47
    %p54 = scmp.eq.s32.totalorder %s16, 1
    %p55 = por %p53, %p54
    %p56 = scmp.ne.s32.totalorder %s47, %s48
    %p57 = scmp.eq.s32.totalorder %s16, 0
    %p58 = por %p56, %p57
    %p59 = scmp.ne.s32.totalorder %s47, %s48
    %p60 = scmp.eq.s32.totalorder %s17, 1
    %p61 = por %p59, %p60
    %p63 = scmp.ne.s32.totalorder %s48, %s62
    %p64 = scmp.eq.s32.totalorder %s17, 0
    %p65 = por %p63, %p64
    %s67 = sadd.s32 %s66, 1
    %p70 = scmp.eq.s32.totalorder %s11, 1
    %p71 = scmp.ne.s32.totalorder %s66, %s68
    %p72 = scmp.eq.s32.totalorder %s11, 0
    %p73 = por %p71, %p72
    %p74 = scmp.ne.s32.totalorder %s66, %s68
    %p75 = scmp.eq.s32.totalorder %s16, 1
    %p76 = por %p74, %p75
    %p77 = scmp.ne.s32.totalorder %s68, %s69
    %p78 = scmp.eq.s32.totalorder %s16, 0
    %p79 = por %p77, %p78
    %p80 = scmp.ne.s32.totalorder %s68, %s69
    %p81 = scmp.eq.s32.totalorder %s17, 1
    %p82 = por %p80, %p81
    %p84 = scmp.ne.s32.totalorder %s69, %s83
    %p85 = scmp.eq.s32.totalorder %s17, 0
    %p86 = por %p84, %p85
    %s88 = sadd.s32 %s87, 1
    %p91 = scmp.eq.s32.totalorder %s11, 1
    %p92 = scmp.ne.s32.totalorder %s87, %s89
    %p93 = scmp.eq.s32.totalorder %s11, 0
    %p94 = por %p92, %p93
    %p95 = scmp.ne.s32.totalorder %s87, %s89
    %p96 = scmp.eq.s32.totalorder %s16, 1
    %p97 = por %p95, %p96
    %p98 = scmp.ne.s32.totalorder %s89, %s90
    %p99 = scmp.eq.s32.totalorder %s16, 0
    %p100 = por %p98, %p99
    %p101 = scmp.ne.s32.totalorder %s89, %s90
    %p102 = scmp.eq.s32.totalorder %s17, 1
    %p103 = por %p101, %p102
    %p105 = scmp.ne.s32.totalorder %s90, %s104
    %p106 = scmp.eq.s32.totalorder %s17, 0
    %p107 = por %p105, %p106
    %s109 = sadd.s32 %s108, 1
    %p112 = scmp.eq.s32.totalorder %s11, 1
    %p113 = scmp.ne.s32.totalorder %s108, %s110
    %p114 = scmp.eq.s32.totalorder %s11, 0
    %p115 = por %p113, %p114
    %p116 = scmp.ne.s32.totalorder %s108, %s110
    %p117 = scmp.eq.s32.totalorder %s16, 1
    %p118 = por %p116, %p117
    %p119 = scmp.ne.s32.totalorder %s110, %s111
    %p120 = scmp.eq.s32.totalorder %s16, 0
    %p121 = por %p119, %p120
    %p122 = scmp.ne.s32.totalorder %s110, %s111
    %p123 = scmp.eq.s32.totalorder %s17, 1
    %p124 = por %p122, %p123
    %p126 = scmp.ne.s32.totalorder %s111, %s125
    %p127 = scmp.eq.s32.totalorder %s17, 0
    %p128 = por %p126, %p127
    %s129 = ssub.s32 %s11, %s18
    %p130 = scmp.eq.s32.totalorder %s129, 0
    %s132 = sadd.s32 %s131, 1
    %s133 = scalar_select %p130, %s131, %s132
    %p136 = pneg %p130
    %p137 = scmp.eq.s32.totalorder %s11, 1
    %p138 = por %p136, %p137
    %p139 = scmp.ne.s32.totalorder %s131, %s134
    %p140 = scmp.eq.s32.totalorder %s11, 0
    %p141 = por %p139, %p140
    %p142 = scmp.ne.s32.totalorder %s131, %s134
    %p143 = scmp.eq.s32.totalorder %s16, 1
    %p144 = por %p142, %p143
    %p145 = scmp.ne.s32.totalorder %s134, %s135
    %p146 = scmp.eq.s32.totalorder %s16, 0
    %p147 = por %p145, %p146
    %p148 = scmp.ne.s32.totalorder %s134, %s135
    %p149 = scmp.eq.s32.totalorder %s17, 1
    %p150 = por %p148, %p149
    %p152 = scmp.ne.s32.totalorder %s135, %s151
    %p153 = scmp.eq.s32.totalorder %s17, 0
    %p154 = por %p152, %p153
    %p155 = scmp.le.s32.totalorder 1, %s11
    %p156 = scmp.lt.s32.totalorder %s11, 3
    %p157 = pnand %p155, %p156
    %p158 = pneg %p157
    // Predicated region
    $region9: #{ocr_forward.1} parent=5 // pred_check
      _
    $region10: #{ocr_forward.1} parent=5 // pred_check_branch
      %160 = sbr.rel (%p157) target = $region12
    $region11: #{ocr_forward.1} parent=5 // pred_region
      %s161 = ssub.s32 %s11, 1
      // Predicated region
      $region13: #{ocr_forward.1} parent=11 // pred_check
        %p162 = pneg %p58
      $region14: #{ocr_forward.1} parent=11 // pred_check_branch
        %164 = sbr.rel (%p162) target = $region16
      $region15: #{ocr_forward.1} parent=11 // pred_region
        _
      $region16: #{ocr_forward.1} parent=11 // pred_fallthru
        _
      // Predicated region
      $region17: #{ocr_forward.1} parent=11 // pred_check
        %p165 = pneg %p79
      $region18: #{ocr_forward.1} parent=11 // pred_check_branch
        %167 = sbr.rel (%p165) target = $region20
      $region19: #{ocr_forward.1} parent=11 // pred_region
        _
      $region20: #{ocr_forward.1} parent=11 // pred_fallthru
        _
      // Predicated region
      $region21: #{ocr_forward.1} parent=11 // pred_check
        %p168 = pneg %p100
      $region22: #{ocr_forward.1} parent=11 // pred_check_branch
        %170 = sbr.rel (%p168) target = $region24
      $region23: #{ocr_forward.1} parent=11 // pred_region
        _
      $region24: #{ocr_forward.1} parent=11 // pred_fallthru
        _
      // Predicated region
      $region25: #{ocr_forward.1} parent=11 // pred_check
        %p171 = pneg %p121
      $region26: #{ocr_forward.1} parent=11 // pred_check_branch
        %173 = sbr.rel (%p171) target = $region28
      $region27: #{ocr_forward.1} parent=11 // pred_region
        _
      $region28: #{ocr_forward.1} parent=11 // pred_fallthru
        _
    $region12: #{ocr_forward.1} parent=5 // pred_fallthru
      _
    %p174 = scmp.lt.s32.totalorder %s11, 2
    // Predicated region
    $region29: #{ocr_forward.1} parent=5 // pred_check
      %p175 = pneg %p174
    $region30: #{ocr_forward.1} parent=5 // pred_check_branch
      %177 = sbr.rel (%p175) target = $region32
    $region31: #{ocr_forward.1} parent=5 // pred_region
      // Predicated region
      $region33: #{ocr_forward.1} parent=31 // pred_check
        %p178 = pneg %p31
      $region34: #{ocr_forward.1} parent=31 // pred_check_branch
        %180 = sbr.rel (%p178) target = $region36
      $region35: #{ocr_forward.1} parent=31 // pred_region
        %s181 = smul.u32 4, %s11
        %p182 = scmp.lt.s32.totalorder %s181, 7
        %s183 = scalar_select %p182, %s181, 7
        %s184 = smul.addr %s183, 8
        %s185 = scalar_lea.vmem %s0, %s184
        %s186 = smul.u32 4, %s11
      $region36: #{ocr_forward.1} parent=31 // pred_fallthru
        _
    $region32: #{ocr_forward.1} parent=5 // pred_fallthru
      _
    %p187 = scmp.le.s32.totalorder 1, %s11
    %p188 = scmp.lt.s32.totalorder %s11, 3
    %p189 = pnand %p187, %p188
    %p190 = pneg %p189
    // Predicated region
    $region37: #{ocr_forward.1} parent=5 // pred_check
      _
    $region38: #{ocr_forward.1} parent=5 // pred_check_branch
      %192 = sbr.rel (%p189) target = $region40
    $region39: #{ocr_forward.1} parent=5 // pred_region
      %s193 = ssub.s32 %s11, 1
      %s194 = smul.u32 4, %s16
      %p195 = scmp.lt.s32.totalorder %s194, 7
      %s196 = scalar_select %p195, %s194, 7
      %s197 = smul.addr %s196, 8
      %s198 = scalar_lea.vmem %s0, %s197
      %p199 = pneg %p37
      %p200 = pneg %p34
      %p201 = pneg %p58
      %p202 = pneg %p55
      %p203 = pneg %p79
      %p204 = pneg %p76
      %p205 = pneg %p100
      %p206 = pneg %p97
      %p207 = pneg %p121
      %p208 = pneg %p118
      %p209 = pneg %p147
      %p210 = pneg %p144
      %s211 = smul.u32 10, %s16
      %p212 = scmp.lt.s32.totalorder %s211, 19
      %s213 = scalar_select %p212, %s211, 19
      %s214 = smul.addr %s213, 8
      %s215 = scalar_lea.vmem %s5, %s214
      %s216 = smul.u32 4, %s16
      %p217 = scmp.lt.s32.totalorder %s216, 7
      %s218 = scalar_select %p217, %s216, 7
      %s219 = smul.addr %s218, 8
      %s220 = scalar_lea.vmem %s0, %s219
      %s221 = smul.u32 4, %s16
      %s222 = smul.u32 10, %s16
      %p223 = scmp.lt.s32.totalorder %s222, 19
      %s224 = scalar_select %p223, %s222, 19
      %s225 = smul.addr %s224, 8
      %s226 = scalar_lea.vmem %s5, %s225
      %s227 = smul.u32 10, %s16
      %v229 = vld [vmem:[%s220] sm:$0xff]
      %v230 = vld [vmem:[%s220 + $0x8] sm:$0xff]
      %v231 = vld [vmem:[%s220 + $0x10] sm:$0xff]
      %v232 = vld [vmem:[%s220 + $0x18] sm:$0xff]
      %v233 = vpack.c.bf16 %v230, %v229
      %v234 = vpack.c.bf16 %v232, %v231
      %v235 = vld [vmem:[%s1] sm:$0xf]
      %v236 = vld [vmem:[%s1 + $0x4] sm:$0xf]
      %v237 = vld [vmem:[%s1 + $0x8] sm:$0xf]
      %v238 = vld [vmem:[%s1 + $0xc] sm:$0xf]
      %v239 = vld [vmem:[%s1 + $0x10] sm:$0xf]
      %v240 = vld [vmem:[%s1 + $0x14] sm:$0xf]
      %v241 = vld [vmem:[%s1 + $0x18] sm:$0xf]
      %v242 = vld [vmem:[%s1 + $0x1c] sm:$0xf]
      %v243 = vld [vmem:[%s1 + $0x20] sm:$0xf]
      %v244 = vld [vmem:[%s1 + $0x24] sm:$0xf]
      %v255 = vunpack.c.l.b16 %v235
      %v256 = vunpack.c.l.b16 %v236
      %v257 = vunpack.c.l.b16 %v237
      %v258 = vunpack.c.l.b16 %v238
      %v259 = vunpack.c.l.b16 %v239
      %v260 = vunpack.c.l.b16 %v240
      %v261 = vunpack.c.l.b16 %v241
      %v262 = vunpack.c.l.b16 %v242
      %v263 = vunpack.c.l.b16 %v243
      %v264 = vunpack.c.l.b16 %v244
      %v265 = vpack.c.b16 %v256, %v255
      %v266 = vpack.c.b16 %v258, %v257
      %v267 = vpack.c.b16 %v260, %v259
      %v268 = vpack.c.b16 %v262, %v261
      %v269 = vpack.c.b16 %v264, %v263
      %vm270 = vcmask 261120
      %v272 = vsel %vm270, %v265, 0
      %v275 = vsel %vm270, %v266, 0
      %v278 = vsel %vm270, %v267, 0
      %v281 = vsel %vm270, %v268, 0
      %v284 = vsel %vm270, %v269, 0
      %286 = vmatprep.subr.bf16.mxu0 0
      %287 = vmatpush1.bf16.msra.mxu0 %v233
      %288 = vmatprep.subr.bf16.mxu0 0
      %289 = vmatpush1.bf16.msra.mxu0 %v234
      %290 = vmatprep.subr.bf16.mxu0 0
      %291 = vmatpush1.bf16.msra.mxu0 0
      %292 = vmatprep.subr.bf16.mxu0 0
      %293 = vmatpush1.bf16.msra.mxu0 0
      %294 = vmatprep.subr.bf16.mxu0 0
      %295 = vmatpush1.bf16.msra.mxu0 0
      %296 = vmatprep.subr.bf16.mxu0 0
      %297 = vmatpush1.bf16.msra.mxu0 0
      %298 = vmatprep.subr.bf16.mxu0 0
      %299 = vmatpush1.bf16.msra.mxu0 0
      %300 = vmatprep.subr.bf16.mxu0 0
      %301 = vmatpush1.bf16.msra.mxu0 0
      %302 = vmatprep.subr.bf16.mxu0 0
      %303 = vmatpush1.bf16.msra.mxu0 0
      %304 = vmatprep.subr.bf16.mxu0 0
      %305 = vmatpush1.bf16.msra.mxu0 0
      %306 = vmatprep.subr.bf16.mxu0 0
      %307 = vmatpush1.bf16.msra.mxu0 0
      %308 = vmatprep.subr.bf16.mxu0 0
      %309 = vmatpush1.bf16.msra.mxu0 0
      %310 = vmatprep.subr.bf16.mxu0 0
      %311 = vmatpush1.bf16.msra.mxu0 0
      %312 = vmatprep.subr.bf16.mxu0 0
      %313 = vmatpush1.bf16.msra.mxu0 0
      %314 = vmatprep.subr.bf16.mxu0 0
      %315 = vmatpush1.bf16.msra.mxu0 0
      %316 = vmatprep.subr.bf16.mxu0 0
      %317 = vmatpush1.bf16.msra.mxu0 0
      %318 = vmatprep.mubr.bf16.mxu0 0
      %319 = vmatmul.mubr.bf16.gmra.mrb[0].mxu0 %v272
      %v320 = vpop.f32.mrb[0].mxu0
      %v321 = vadd.f32 0.0, %v320
      %v322 = vpop.f32.mrb[0].mxu0
      %v323 = vpop.f32.mrb[0].mxu0
      %v324 = vadd.f32 0.0, %v323
      %v325 = vpop.f32.mrb[0].mxu0
      %326 = vmatprep.mubr.bf16.mxu0 0
      %327 = vmatmul.mubr.bf16.gmra.mrb[0].mxu0 %v275
      %v328 = vpop.f32.mrb[0].mxu0
      %v329 = vadd.f32 0.0, %v328
      %v330 = vpop.f32.mrb[0].mxu0
      %v331 = vpop.f32.mrb[0].mxu0
      %v332 = vadd.f32 0.0, %v331
      %v333 = vpop.f32.mrb[0].mxu0
      %334 = vmatprep.mubr.bf16.mxu0 0
      %335 = vmatmul.mubr.bf16.gmra.mrb[0].mxu0 %v278
      %v336 = vpop.f32.mrb[0].mxu0
      %v337 = vadd.f32 0.0, %v336
      %v338 = vpop.f32.mrb[0].mxu0
      %v339 = vpop.f32.mrb[0].mxu0
      %v340 = vadd.f32 0.0, %v339
      %v341 = vpop.f32.mrb[0].mxu0
      %342 = vmatprep.mubr.bf16.mxu0 0
      %343 = vmatmul.mubr.bf16.gmra.mrb[0].mxu0 %v281
      %v344 = vpop.f32.mrb[0].mxu0
      %v345 = vadd.f32 0.0, %v344
      %v346 = vpop.f32.mrb[0].mxu0
      %v347 = vpop.f32.mrb[0].mxu0
      %v348 = vadd.f32 0.0, %v347
      %v349 = vpop.f32.mrb[0].mxu0
      %350 = vmatprep.mubr.bf16.mxu0 0
      %351 = vmatmul.mubr.bf16.gmra.mrb[0].mxu0 %v284
      %v352 = vpop.f32.mrb[0].mxu0
      %v353 = vadd.f32 0.0, %v352
      %v354 = vpop.f32.mrb[0].mxu0
      %v355 = vpop.f32.mrb[0].mxu0
      %v356 = vadd.f32 0.0, %v355
      %v357 = vpop.f32.mrb[0].mxu0
      %358 = vdwg.mxu0
      %v359 = vpack.c.bf16 %v324, %v321
      %v360 = vpack.c.bf16 %v332, %v329
      %v361 = vpack.c.bf16 %v340, %v337
      %v362 = vpack.c.bf16 %v348, %v345
      %v363 = vpack.c.bf16 %v356, %v353
      %v364 = vld [vmem:[%s2] sm:$0xf]
      %v365 = vld [vmem:[%s2 + $0x4] sm:$0xf]
      %v366 = vld [vmem:[%s2 + $0x8] sm:$0xf]
      %v367 = vld [vmem:[%s2 + $0xc] sm:$0xf]
      %v368 = vld [vmem:[%s2 + $0x10] sm:$0xf]
      %v369 = vld [vmem:[%s2 + $0x14] sm:$0xf]
      %v376 = vunpack.c.l.b16 %v364
      %v377 = vunpack.c.l.b16 %v365
      %v378 = vunpack.c.l.b16 %v366
      %v379 = vunpack.c.l.b16 %v367
      %v380 = vunpack.c.l.b16 %v368
      %v381 = vunpack.c.l.b16 %v369
      %v382 = vpack.c.b16 %v377, %v376
      %v383 = vpack.c.b16 %v379, %v378
      %v384 = vpack.c.b16 %v381, %v380
      %vm388 = vcmask 392192
      %v390 = vsel %vm388, %v359, 0
      %v393 = vsel %vm388, %v360, 0
      %v396 = vsel %vm388, %v361, 0
      %v399 = vsel %vm388, %v362, 0
      %v402 = vsel %vm388, %v363, 0
      %404 = vmatprep.subr.bf16.mxu0 0
      %405 = vmatpush1.bf16.msra.mxu0 %v382
      %406 = vmatprep.subr.bf16.mxu0 0
      %407 = vmatpush1.bf16.msra.mxu0 %v383
      %408 = vmatprep.subr.bf16.mxu0 0
      %409 = vmatpush1.bf16.msra.mxu0 %v384
      %410 = vmatprep.subr.bf16.mxu0 0
      %411 = vmatpush1.bf16.msra.mxu0 0
      %412 = vmatprep.subr.bf16.mxu0 0
      %413 = vmatpush1.bf16.msra.mxu0 0
      %414 = vmatprep.subr.bf16.mxu0 0
      %415 = vmatpush1.bf16.msra.mxu0 0
      %416 = vmatprep.subr.bf16.mxu0 0
      %417 = vmatpush1.bf16.msra.mxu0 0
      %418 = vmatprep.subr.bf16.mxu0 0
      %419 = vmatpush1.bf16.msra.mxu0 0
      %420 = vmatprep.subr.bf16.mxu0 0
      %421 = vmatpush1.bf16.msra.mxu0 0
      %422 = vmatprep.subr.bf16.mxu0 0
      %423 = vmatpush1.bf16.msra.mxu0 0
      %424 = vmatprep.subr.bf16.mxu0 0
      %425 = vmatpush1.bf16.msra.mxu0 0
      %426 = vmatprep.subr.bf16.mxu0 0
      %427 = vmatpush1.bf16.msra.mxu0 0
      %428 = vmatprep.subr.bf16.mxu0 0
      %429 = vmatpush1.bf16.msra.mxu0 0
      %430 = vmatprep.subr.bf16.mxu0 0
      %431 = vmatpush1.bf16.msra.mxu0 0
      %432 = vmatprep.subr.bf16.mxu0 0
      %433 = vmatpush1.bf16.msra.mxu0 0
      %434 = vmatprep.subr.bf16.mxu0 0
      %435 = vmatpush1.bf16.msra.mxu0 0
      %436 = vmatprep.mubr.bf16.mxu0 0
      %437 = vmatmul.mubr.bf16.gmra.mrb[0].mxu0 %v390
      %v438 = vpop.f32.mrb[0].mxu0
      %v439 = vadd.f32 0.0, %v438
      %v440 = vpop.f32.mrb[0].mxu0
      %v441 = vpop.f32.mrb[0].mxu0
      %v442 = vadd.f32 0.0, %v441
      %v443 = vpop.f32.mrb[0].mxu0
      %444 = vmatprep.mubr.bf16.mxu0 0
      %445 = vmatmul.mubr.bf16.gmra.mrb[0].mxu0 %v393
      %v446 = vpop.f32.mrb[0].mxu0
      %v447 = vadd.f32 0.0, %v446
      %v448 = vpop.f32.mrb[0].mxu0
      %v449 = vpop.f32.mrb[0].mxu0
      %v450 = vadd.f32 0.0, %v449
      %v451 = vpop.f32.mrb[0].mxu0
      %452 = vmatprep.mubr.bf16.mxu0 0
      %453 = vmatmul.mubr.bf16.gmra.mrb[0].mxu0 %v396
      %v454 = vpop.f32.mrb[0].mxu0
      %v455 = vadd.f32 0.0, %v454
      %v456 = vpop.f32.mrb[0].mxu0
      %v457 = vpop.f32.mrb[0].mxu0
      %v458 = vadd.f32 0.0, %v457
      %v459 = vpop.f32.mrb[0].mxu0
      %460 = vmatprep.mubr.bf16.mxu0 0
      %461 = vmatmul.mubr.bf16.gmra.mrb[0].mxu0 %v399
      %v462 = vpop.f32.mrb[0].mxu0
      %v463 = vadd.f32 0.0, %v462
      %v464 = vpop.f32.mrb[0].mxu0
      %v465 = vpop.f32.mrb[0].mxu0
      %v466 = vadd.f32 0.0, %v465
      %v467 = vpop.f32.mrb[0].mxu0
      %468 = vmatprep.mubr.bf16.mxu0 0
      %469 = vmatmul.mubr.bf16.gmra.mrb[0].mxu0 %v402
      %v470 = vpop.f32.mrb[0].mxu0
      %v471 = vadd.f32 0.0, %v470
      %v472 = vpop.f32.mrb[0].mxu0
      %v473 = vpop.f32.mrb[0].mxu0
      %v474 = vadd.f32 0.0, %v473
      %v475 = vpop.f32.mrb[0].mxu0
      %476 = vdwg.mxu0
      %v477 = vmax.f32 %v439, 0.0
      %v478 = vmax.f32 %v442, 0.0
      %v479 = vmax.f32 %v447, 0.0
      %v480 = vmax.f32 %v450, 0.0
      %v481 = vmax.f32 %v455, 0.0
      %v482 = vmax.f32 %v458, 0.0
      %v483 = vmax.f32 %v463, 0.0
      %v484 = vmax.f32 %v466, 0.0
      %v485 = vmax.f32 %v471, 0.0
      %v486 = vmax.f32 %v474, 0.0
      %v487 = vmin.f32 %v477, 1.0
      %v488 = vmin.f32 %v478, 1.0
      %v489 = vmin.f32 %v479, 1.0
      %v490 = vmin.f32 %v480, 1.0
      %v491 = vmin.f32 %v481, 1.0
      %v492 = vmin.f32 %v482, 1.0
      %v493 = vmin.f32 %v483, 1.0
      %v494 = vmin.f32 %v484, 1.0
      %v495 = vmin.f32 %v485, 1.0
      %v496 = vmin.f32 %v486, 1.0
      %v497 = vpack.c.bf16 %v488, %v487
      %v498 = vpack.c.bf16 %v490, %v489
      %v499 = vpack.c.bf16 %v492, %v491
      %v500 = vpack.c.bf16 %v494, %v493
      %v501 = vpack.c.bf16 %v496, %v495
      %v502 = vld [vmem:[%s3] sm:$0xf]
      %v503 = vld [vmem:[%s3 + $0x4] sm:$0xf]
      %v504 = vld [vmem:[%s3 + $0x8] sm:$0xf]
      %v505 = vld [vmem:[%s3 + $0xc] sm:$0xf]
      %v506 = vld [vmem:[%s3 + $0x10] sm:$0xf]
      %v507 = vld [vmem:[%s3 + $0x14] sm:$0xf]
      %v508 = vld [vmem:[%s3 + $0x18] sm:$0xf]
      %v509 = vld [vmem:[%s3 + $0x1c] sm:$0xf]
      %v510 = vld [vmem:[%s3 + $0x20] sm:$0xf]
      %v511 = vld [vmem:[%s3 + $0x24] sm:$0xf]
      %v512 = vld [vmem:[%s3 + $0x28] sm:$0xf]
      %v513 = vld [vmem:[%s3 + $0x2c] sm:$0xf]
      %v514 = vld [vmem:[%s3 + $0x30] sm:$0xf]
      %v515 = vld [vmem:[%s3 + $0x34] sm:$0xf]
      %v516 = vld [vmem:[%s3 + $0x38] sm:$0xf]
      %v517 = vld [vmem:[%s4] sm:$0x1]
      %v519 = vlaneseq
      %v520 = vshrl.u32 %v519, 7
      %v521 = vsub.s32 0, %v520
      %v522 = vrot.slane %v517, %v521
      %v539 = vunpack.c.l.b16 %v502
      %v540 = vunpack.c.l.b16 %v503
      %v541 = vunpack.c.l.b16 %v504
      %v542 = vunpack.c.l.b16 %v505
      %v543 = vunpack.c.l.b16 %v506
      %v544 = vunpack.c.l.b16 %v507
      %v545 = vunpack.c.l.b16 %v508
      %v546 = vunpack.c.l.b16 %v509
      %v547 = vunpack.c.l.b16 %v510
      %v548 = vunpack.c.l.b16 %v511
      %v549 = vunpack.c.l.b16 %v512
      %v550 = vunpack.c.l.b16 %v513
      %v551 = vunpack.c.l.b16 %v514
      %v552 = vunpack.c.l.b16 %v515
      %v553 = vunpack.c.l.b16 %v516
      %v554 = vpack.c.b16 %v540, %v539
      %v555 = vpack.c.b16 %v542, %v541
      %v556 = vpack.c.b16 %v544, %v543
      %v557 = vpack.c.b16 %v546, %v545
      %v558 = vpack.c.b16 %v548, %v547
      %v559 = vpack.c.b16 %v550, %v549
      %v560 = vpack.c.b16 %v552, %v551
      %v561 = vpack.c.b16 %v553, %v553
      %vm569 = vcmask 982016
      %v571 = vsel %vm569, %v497, 0
      %v574 = vsel %vm569, %v498, 0
      %v577 = vsel %vm569, %v499, 0
      %v580 = vsel %vm569, %v500, 0
      %v583 = vsel %vm569, %v501, 0
      %vm585 = vcmask 1043456
      %v587 = vsel %vm585, %v561, 0
      %589 = vmatprep.subr.bf16.mxu0 0
      %590 = vmatpush1.bf16.msra.mxu0 %v554
      %591 = vmatprep.subr.bf16.mxu0 0
      %592 = vmatpush1.bf16.msra.mxu0 %v555
      %593 = vmatprep.subr.bf16.mxu0 0
      %594 = vmatpush1.bf16.msra.mxu0 %v556
      %595 = vmatprep.subr.bf16.mxu0 0
      %596 = vmatpush1.bf16.msra.mxu0 %v557
      %597 = vmatprep.subr.bf16.mxu0 0
      %598 = vmatpush1.bf16.msra.mxu0 %v558
      %599 = vmatprep.subr.bf16.mxu0 0
      %600 = vmatpush1.bf16.msra.mxu0 %v559
      %601 = vmatprep.subr.bf16.mxu0 0
      %602 = vmatpush1.bf16.msra.mxu0 %v560
      %603 = vmatprep.subr.bf16.mxu0 0
      %604 = vmatpush1.bf16.msra.mxu0 %v587
      %605 = vmatprep.subr.bf16.mxu0 0
      %606 = vmatpush1.bf16.msra.mxu0 0
      %607 = vmatprep.subr.bf16.mxu0 0
      %608 = vmatpush1.bf16.msra.mxu0 0
      %609 = vmatprep.subr.bf16.mxu0 0
      %610 = vmatpush1.bf16.msra.mxu0 0
      %611 = vmatprep.subr.bf16.mxu0 0
      %612 = vmatpush1.bf16.msra.mxu0 0
      %613 = vmatprep.subr.bf16.mxu0 0
      %614 = vmatpush1.bf16.msra.mxu0 0
      %615 = vmatprep.subr.bf16.mxu0 0
      %616 = vmatpush1.bf16.msra.mxu0 0
      %617 = vmatprep.subr.bf16.mxu0 0
      %618 = vmatpush1.bf16.msra.mxu0 0
      %619 = vmatprep.subr.bf16.mxu0 0
      %620 = vmatpush1.bf16.msra.mxu0 0
      %621 = vmatprep.mubr.bf16.mxu0 0
      %622 = vmatmul.mubr.bf16.gmra.mrb[0].mxu0 %v571
      %v623 = vpop.f32.mrb[0].mxu0
      %v624 = vadd.f32 %v522, %v623
      %v625 = vpop.f32.mrb[0].mxu0
      %v626 = vpop.f32.mrb[0].mxu0
      %v627 = vadd.f32 %v522, %v626
      %v628 = vpop.f32.mrb[0].mxu0
      %629 = vmatprep.mubr.bf16.mxu0 0
      %630 = vmatmul.mubr.bf16.gmra.mrb[0].mxu0 %v574
      %v631 = vpop.f32.mrb[0].mxu0
      %v632 = vadd.f32 %v522, %v631
      %v633 = vpop.f32.mrb[0].mxu0
      %v634 = vpop.f32.mrb[0].mxu0
      %v635 = vadd.f32 %v522, %v634
      %v636 = vpop.f32.mrb[0].mxu0
      %637 = vmatprep.mubr.bf16.mxu0 0
      %638 = vmatmul.mubr.bf16.gmra.mrb[0].mxu0 %v577
      %v639 = vpop.f32.mrb[0].mxu0
      %v640 = vadd.f32 %v522, %v639
      %v641 = vpop.f32.mrb[0].mxu0
      %v642 = vpop.f32.mrb[0].mxu0
      %v643 = vadd.f32 %v522, %v642
      %v644 = vpop.f32.mrb[0].mxu0
      %645 = vmatprep.mubr.bf16.mxu0 0
      %646 = vmatmul.mubr.bf16.gmra.mrb[0].mxu0 %v580
      %v647 = vpop.f32.mrb[0].mxu0
      %v648 = vadd.f32 %v522, %v647
      %v649 = vpop.f32.mrb[0].mxu0
      %v650 = vpop.f32.mrb[0].mxu0
      %v651 = vadd.f32 %v522, %v650
      %v652 = vpop.f32.mrb[0].mxu0
      %653 = vmatprep.mubr.bf16.mxu0 0
      %654 = vmatmul.mubr.bf16.gmra.mrb[0].mxu0 %v583
      %v655 = vpop.f32.mrb[0].mxu0
      %v656 = vadd.f32 %v522, %v655
      %v657 = vpop.f32.mrb[0].mxu0
      %v658 = vpop.f32.mrb[0].mxu0
      %v659 = vadd.f32 %v522, %v658
      %v660 = vpop.f32.mrb[0].mxu0
      %661 = vdwg.mxu0
      %662 = vst [vmem:[%s226] sm:$0xff] %v624
      %663 = vst [vmem:[%s226 + $0x8] sm:$0xff] %v627
      %664 = vst [vmem:[%s226 + $0x10] sm:$0xff] %v632
      %665 = vst [vmem:[%s226 + $0x18] sm:$0xff] %v635
      %666 = vst [vmem:[%s226 + $0x20] sm:$0xff] %v640
      %667 = vst [vmem:[%s226 + $0x28] sm:$0xff] %v643
      %668 = vst [vmem:[%s226 + $0x30] sm:$0xff] %v648
      %669 = vst [vmem:[%s226 + $0x38] sm:$0xff] %v651
      %670 = vst [vmem:[%s226 + $0x40] sm:$0xff] %v656
      %671 = vst [vmem:[%s226 + $0x48] sm:$0xff] %v659
      %s672 = smul.u32 10, %s16
      %p673 = scmp.lt.s32.totalorder %s672, 19
      %s674 = scalar_select %p673, %s672, 19
      %s675 = smul.addr %s674, 8
      %s676 = scalar_lea.vmem %s5, %s675
      // Predicated region
      $region41: #{ocr_forward.1} parent=39 // pred_check
        %p677 = pneg %p144
      $region42: #{ocr_forward.1} parent=39 // pred_check_branch
        %679 = sbr.rel (%p677) target = $region44
      $region43: #{ocr_forward.1} parent=39 // pred_region
        %s680 = smul.u32 10, %s16
      $region44: #{ocr_forward.1} parent=39 // pred_fallthru
        _
    $region40: #{ocr_forward.1} parent=5 // pred_fallthru
      _
    %p681 = scmp.le.s32.totalorder 2, %s11
    // Predicated region
    $region45: #{ocr_forward.1} parent=5 // pred_check
      %p682 = pneg %p681
    $region46: #{ocr_forward.1} parent=5 // pred_check_branch
      %684 = sbr.rel (%p682) target = $region48
    $region47: #{ocr_forward.1} parent=5 // pred_region
      %s685 = ssub.s32 %s11, 2
      // Predicated region
      $region49: #{ocr_forward.1} parent=47 // pred_check
        %p686 = pneg %p150
      $region50: #{ocr_forward.1} parent=47 // pred_check_branch
        %688 = sbr.rel (%p686) target = $region52
      $region51: #{ocr_forward.1} parent=47 // pred_region
        %s689 = smul.u32 10, %s17
        %p690 = scmp.lt.s32.totalorder %s689, 19
        %s691 = scalar_select %p690, %s689, 19
        %s692 = smul.addr %s691, 8
        %s693 = scalar_lea.vmem %s5, %s692
      $region52: #{ocr_forward.1} parent=47 // pred_fallthru
        _
    $region48: #{ocr_forward.1} parent=5 // pred_fallthru
      _
  $region6: #{ocr_forward.1} parent=0 // loop_footer
    %s15 = sadd.s32 1, %s11
  $region7: #{ocr_forward.1} parent=0 // loop_footer_branch
    %10 = sbr.rel target = $region3
  $region8: #{ocr_forward.1} parent=0 // loop_exit
    _

</llo_original>
